<compile_context>
chip_gen: v5e
topology: v5e:2x2
jax: 0.10.0
libtpu: 0.0.40
codegen_flags: <defaults>
</compile_context>

<pallas_src>
import jax
import jax.numpy as jnp
from jax.experimental import pallas as pl
from jax.experimental.pallas import tpu as pltpu

_LANE = 128  # lane width (last dim of a vreg tile)


def _round_up(v, m):
    return ((v + m - 1) // m) * m


def _ceil_div(a, b):
    return (a + b - 1) // b


def _vmem_tile_bytes(rows, cols, itemsize, sublane):
    """VMEM footprint of one (rows, cols) buffer after (sublane, 128) layout padding."""
    return (_round_up(max(rows, 1), sublane)
            * _round_up(max(cols, 1), _LANE)
            * itemsize)


def _vmem_caps():
    """(per-step working-set budget, scoped vmem limit cap) in bytes, per TensorCore."""
    try:
        cap = int(pltpu.get_tpu_info().vmem_capacity_bytes)
    except Exception:
        cap = 64 * 1024 * 1024  # assume the smallest generation (v7x: 64 MiB / TC)
    budget = min(cap // 2, 48 * 1024 * 1024)
    limit_cap = max(32 * 1024 * 1024, min(cap - 8 * 1024 * 1024, 96 * 1024 * 1024))
    return budget, limit_cap


def _linear_kernel(x_ref, w_ref, b_ref, z_ref):
    # Single-K path: full (p, c) W resident in VMEM (constant block index ->
    # fetched from HBM once).  MXU matmul with f32 accumulation, VPU bias add.
    z_ref[...] = (
        jnp.dot(x_ref[...], w_ref[...], preferred_element_type=jnp.float32)
        + b_ref[...]
    ).astype(z_ref.dtype)


def _linear_kernel_ktiled(x_ref, w_ref, b_ref, z_ref):
    # K-tiled path: the output block index is (i, 0), constant across k, so the
    # f32 output block stays VMEM-resident and we accumulate directly into it.
    k = pl.program_id(1)
    partial = jnp.dot(x_ref[...], w_ref[...], preferred_element_type=jnp.float32)

    @pl.when(k == 0)
    def _():
        z_ref[...] = partial

    @pl.when(k > 0)
    def _():
        z_ref[...] = z_ref[...] + partial

    @pl.when(k == pl.num_programs(1) - 1)
    def _():
        z_ref[...] = z_ref[...] + b_ref[...]


def softmax_regression_forward(x, W, b, *, tile_n=None, tile_k=None):
    """Compute z = x @ W + b with a Pallas TPU kernel.

    x: (n, p);  W: (p, c);  b: (c,)   ->   z: (n, c) float32
    """
    n, p = x.shape
    p2, c = W.shape
    assert p == p2 and b.shape == (c,)

    out_dtype = jnp.float32
    x_itemsize = jnp.dtype(x.dtype).itemsize
    w_itemsize = jnp.dtype(W.dtype).itemsize
    # f32 -> 8-row sublane; bf16 packs 2 rows/sublane -> use multiples of 16.
    sublane = max(8, 8 * (4 // max(x_itemsize, 1)))

    budget, vmem_limit_cap = _vmem_caps()

    b2d = b.reshape(1, c).astype(out_dtype)

    # --- K-tiling only when the resident W slab would not comfortably fit. ---
    w_slab_bytes = 2 * _vmem_tile_bytes(p, c, w_itemsize, 8)
    use_k_tiling = (tile_k is not None) or (w_slab_bytes > budget // 2)

    if use_k_tiling:
        if tile_k is None:
            p_pad = _round_up(p, _LANE)
            # Largest multiple of 128 (<= 2048) dividing p_pad: at most <128
            # explicit-zero K columns of padding, and no mostly-zero K slabs.
            tile_k = _LANE
            for cand in range(_LANE, min(p_pad, 2048) + 1, _LANE):
                if p_pad % cand == 0:
                    tile_k = cand
        else:
            assert tile_k % _LANE == 0, "tile_k must be a multiple of 128"
            p_pad = _round_up(p, tile_k)
        k_cols = tile_k
    else:
        p_pad = p
        k_cols = p

    def per_step_bytes(tn):
        return (
            2 * _vmem_tile_bytes(tn, k_cols, x_itemsize, sublane)  # x tile (double-buffered)
            + 2 * _vmem_tile_bytes(k_cols, c, w_itemsize, 8)       # W slab
            + 2 * _vmem_tile_bytes(tn, c, 4, 8)                    # f32 output block
            + 2 * _vmem_tile_bytes(1, c, 4, 8)                     # bias row
        )

    if tile_n is None:
        # Biggest tile that fits the budget (capped at 1024 rows); only require
        # >= 2 row tiles so both v7x TensorCores get work (near-free on the
        # single-TC v5e/v6e -- one extra ~0.35 us grid step).
        tile_n = min(1024, _round_up(n, sublane))
        if n > sublane:
            tile_n = min(tile_n, _round_up(_ceil_div(n, 2), sublane))
        while tile_n > sublane and per_step_bytes(tile_n) > budget:
            tile_n = max(sublane, _round_up(tile_n // 2, sublane))
    assert tile_n % sublane == 0, "tile_n must be a multiple of the sublane count"

    # Ragged last row-block: out-of-bounds output rows are dropped, and with no
    # cross-row reduction the garbage input rows in the last block are harmless.
    grid_n = pl.cdiv(n, tile_n)

    vmem_limit = int(min(vmem_limit_cap,
                         max(32 * 1024 * 1024, 2 * per_step_bytes(tile_n))))

    if not use_k_tiling:
        return pl.pallas_call(
            _linear_kernel,
            out_shape=jax.ShapeDtypeStruct((n, c), out_dtype),
            grid=(grid_n,),
            in_specs=[
                pl.BlockSpec((tile_n, p), lambda i: (i, 0)),  # x row tile
                pl.BlockSpec((p, c), lambda i: (0, 0)),       # full W, fetched once
                pl.BlockSpec((1, c), lambda i: (0, 0)),       # bias row
            ],
            out_specs=pl.BlockSpec((tile_n, c), lambda i: (i, 0)),
            compiler_params=pltpu.CompilerParams(
                dimension_semantics=("parallel",),
                vmem_limit_bytes=vmem_limit,
            ),
        )(x, W, b2d)

    # --- K-tiled path.  K padding MUST be explicit zeros (never ragged on K):
    # garbage x columns would otherwise multiply into valid output rows. ---
    xk, Wk = x, W
    if p_pad != p:
        xk = jnp.zeros((n, p_pad), x.dtype).at[:, :p].set(x)
        Wk = jnp.zeros((p_pad, c), W.dtype).at[:p, :].set(W)

    return pl.pallas_call(
        _linear_kernel_ktiled,
        out_shape=jax.ShapeDtypeStruct((n, c), out_dtype),
        grid=(grid_n, p_pad // tile_k),
        in_specs=[
            pl.BlockSpec((tile_n, tile_k), lambda i, k: (i, k)),  # x K slab
            pl.BlockSpec((tile_k, c), lambda i, k: (k, 0)),       # W K slab
            pl.BlockSpec((1, c), lambda i, k: (0, 0)),            # bias row
        ],
        out_specs=pl.BlockSpec((tile_n, c), lambda i, k: (i, 0)),
        compiler_params=pltpu.CompilerParams(
            dimension_semantics=("parallel", "arbitrary"),
            vmem_limit_bytes=vmem_limit,
        ),
    )(xk, Wk, b2d)


if __name__ == "__main__":
    # Small shapes consistent with the module: n instances, p features, c classes.
    n, p, c = 8, 32, 16

    key = jax.random.PRNGKey(0)
    x = jax.random.normal(key, (n, p), dtype=jnp.float32)

    # Module __init__: W (p, c) and b (c,) initialized as all-zeros.
    W = jnp.zeros((p, c), dtype=jnp.float32)
    b = jnp.zeros((c,), dtype=jnp.float32)

    z = jax.block_until_ready(softmax_regression_forward(x, W, b))
    assert z.shape == (n, c)
    assert jnp.allclose(z, x @ W + b, atol=1e-5), "mismatch (zero params)"

    # Non-zero parameters to exercise the matmul + bias path.
    kW, kb = jax.random.split(jax.random.PRNGKey(1))
    W2 = jax.random.normal(kW, (p, c), dtype=jnp.float32)
    b2 = jax.random.normal(kb, (c,), dtype=jnp.float32)
    z2 = jax.block_until_ready(softmax_regression_forward(x, W2, b2))
    assert jnp.allclose(z2, x @ W2 + b2, atol=1e-4), "mismatch (nonzero params)"

    # Ragged row blocks (n=45 not a multiple of tile_n) + K-tiled accumulate-
    # into-output path (tile_k=128 divides p=640 -> no K padding, no x copy).
    n3, p3, c3 = 45, 640, 10
    k1, k2, k3 = jax.random.split(jax.random.PRNGKey(2), 3)
    x3 = jax.random.normal(k1, (n3, p3), dtype=jnp.float32)
    W3 = jax.random.normal(k2, (p3, c3), dtype=jnp.float32) * 0.05
    b3 = jax.random.normal(k3, (c3,), dtype=jnp.float32)
    z3 = jax.block_until_ready(
        softmax_regression_forward(x3, W3, b3, tile_k=128))
    assert z3.shape == (n3, c3)
    assert jnp.allclose(z3, x3 @ W3 + b3, atol=1e-2, rtol=1e-3), \
        "mismatch (K-tiled / ragged path)"

    # TODO(synk): compute_L / backward / train / test are training-loop
    # utilities (CrossEntropyLoss + autograd + SGD + accuracy loop), not part
    # of the forward hot path; not kernelized.
    print("KERNEL_OK")
</pallas_src>

<mosaic_0001>
module attributes {stable_mosaic.version = 11 : i64} {
  func.func @_linear_kernel(%arg0: i32, %arg1: memref<8x32xf32, #tpu.memory_space<vmem>>, %arg2: memref<32x16xf32, #tpu.memory_space<vmem>>, %arg3: memref<1x16xf32, #tpu.memory_space<vmem>>, %arg4: memref<8x16xf32, #tpu.memory_space<vmem>>) attributes {dimension_semantics = [#tpu.dimension_semantics<parallel>], iteration_bounds = array<i64: 1>, scalar_prefetch = 0 : i64, scratch_operands = 0 : i64, tpu.core_type = #tpu.core_type<tc>, window_params = [{transform_indices = @transform_0, window_bounds = array<i64: 8, 32>}, {pipeline_mode = #tpu.pipeline_mode<synchronous>, transform_indices = @transform_1, window_bounds = array<i64: 32, 16>}, {pipeline_mode = #tpu.pipeline_mode<synchronous>, transform_indices = @transform_2, window_bounds = array<i64: 1, 16>}, {transform_indices = @transform_3, window_bounds = array<i64: 8, 16>}]} {
    %c0 = arith.constant 0 : index
    %c0_0 = arith.constant 0 : index
    %0 = vector.load %arg1[%c0, %c0_0] : memref<8x32xf32, #tpu.memory_space<vmem>>, vector<8x32xf32>
    %c0_1 = arith.constant 0 : index
    %c0_2 = arith.constant 0 : index
    %1 = vector.load %arg2[%c0_1, %c0_2] : memref<32x16xf32, #tpu.memory_space<vmem>>, vector<32x16xf32>
    %cst = arith.constant dense<0.000000e+00> : vector<8x16xf32>
    %2 = tpu.matmul %0, %1, %cst {dimension_numbers = #tpu.dot_dimension_numbers<[1], [0], [0], [1], [0, 0, 1, 1], [], []>} : vector<8x32xf32>, vector<32x16xf32>, vector<8x16xf32> -> vector<8x16xf32>
    %c0_3 = arith.constant 0 : index
    %c0_4 = arith.constant 0 : index
    %3 = vector.load %arg3[%c0_3, %c0_4] : memref<1x16xf32, #tpu.memory_space<vmem>>, vector<1x16xf32>
    %4 = vector.broadcast %3 : vector<1x16xf32> to vector<8x16xf32>
    %5 = arith.addf %2, %4 : vector<8x16xf32>
    %c0_5 = arith.constant 0 : index
    %c0_6 = arith.constant 0 : index
    %6 = vector.load %arg4[%c0_5, %c0_6] : memref<8x16xf32, #tpu.memory_space<vmem>>, vector<8x16xf32>
    tpu.vector_store %arg4[%c0_5, %c0_6], %5 {strides = array<i32>} : memref<8x16xf32, #tpu.memory_space<vmem>>, vector<8x16xf32>,
    return
  }
  func.func @transform_0(%arg0: i32) -> (i32, i32) {
    %c0_i32 = arith.constant 0 : i32
    %c0_i32_0 = arith.constant 0 : i32
    return %arg0, %c0_i32 : i32, i32
  }
  func.func @transform_1(%arg0: i32) -> (i32, i32) {
    %c0_i32 = arith.constant 0 : i32
    %c0_i32_0 = arith.constant 0 : i32
    %c0_i32_1 = arith.constant 0 : i32
    return %c0_i32, %c0_i32_0 : i32, i32
  }
  func.func @transform_2(%arg0: i32) -> (i32, i32) {
    %c0_i32 = arith.constant 0 : i32
    %c0_i32_0 = arith.constant 0 : i32
    %c0_i32_1 = arith.constant 0 : i32
    return %c0_i32, %c0_i32_0 : i32, i32
  }
  func.func @transform_3(%arg0: i32) -> (i32, i32) {
    %c0_i32 = arith.constant 0 : i32
    %c0_i32_0 = arith.constant 0 : i32
    return %arg0, %c0_i32 : i32, i32
  }
}

</mosaic_0001>

<llo_original>
// kernel: tpu_custom_call.1
$region0: #{tpu_custom_call.1}
  #allocation0 [shape = 'u32[]', space=smem, size = 0x4, offset = 0x4, fixed_abs, tag = 'smem constant byte address 0x4 - core index']
  #allocation1 [shape = 'u32[72,128]{1,0:T(1,128)}', space=vmem, size = 0x9000, scoped, tag = 'internal scratch']
  %s0 = inlined_call_operand.vmem [shape: f32[8,32], index: 0, kind: input, shape index: {}]
  %s1 = inlined_call_operand.vmem [shape: f32[32,16], index: 1, kind: input, shape index: {}]
  %s2 = inlined_call_operand.vmem [shape: f32[1,16], index: 2, kind: input, shape index: {}]
  %s3 = inlined_call_operand.hbm [shape: f32[8,16], index: 3, kind: output, shape index: {}]
  %s4 = sld [smem:[#allocation0]]
  $region22: #{tpu_custom_call.1} parent=0
    _
  %s6 = ssub.s32 1, %s4
  %s7 = scalar_select 0, %s6, %s4
  $region1: #{tpu_custom_call.1} parent=0
    #allocation2 [shape = 'u8[4096]{0}', space=vmem, size = 0x1000, scoped, tag = 'output window, operand 0, single buffered']
    #allocation3 [shape = 's32[1]{0}', space=sflag, size = 0x4, scoped, tag = 'scoped memory for tpu_custom_call.1']
    %8 = vsyncpa [#allocation3], 0
    // Predicated region
    $region2: #{tpu_custom_call.1} parent=1 // pred_check
      _
    $region3: #{tpu_custom_call.1} parent=1 // pred_check_branch
      %10 = sbr.rel (0) target = $region5
    $region4: #{tpu_custom_call.1} parent=1 // pred_region
      _
    $region5: #{tpu_custom_call.1} parent=1 // pred_fallthru
      _
    // Predicated region
    $region6: #{tpu_custom_call.1} parent=1 // pred_check
      _
    $region7: #{tpu_custom_call.1} parent=1 // pred_check_branch
      %12 = sbr.rel (0) target = $region9
    $region8: #{tpu_custom_call.1} parent=1 // pred_region
      _
    $region9: #{tpu_custom_call.1} parent=1 // pred_fallthru
      _
    // Predicated region
    $region10: #{tpu_custom_call.1} parent=1 // pred_check
      _
    $region11: #{tpu_custom_call.1} parent=1 // pred_check_branch
      %14 = sbr.rel (0) target = $region13
    $region12: #{tpu_custom_call.1} parent=1 // pred_region
      _
    $region13: #{tpu_custom_call.1} parent=1 // pred_fallthru
      _
    %v15 = vld [vmem:[%s0] sm:$0xff]
    %v16 = vld [vmem:[%s1] sm:$0xff]
    %v17 = vld [vmem:[%s1 + $0x8] sm:$0xff]
    %v18 = vld [vmem:[%s1 + $0x10] sm:$0xff]
    %v19 = vld [vmem:[%s1 + $0x18] sm:$0xff]
    %v20 = vld [vmem:[%s2] sm:$0x1]
    %v22 = vperm.slane %v20, 0
    %vm24 = vcmask 261120
    %v26 = vsel %vm24, %v15, 0
    %28 = vmatpush.msra.mxu0 0.0
    %29 = vmatpush.msra.mxu0 0.0
    %30 = vmatpush.msra.mxu0 0.0
    %31 = vmatpush.msra.mxu0 0.0
    %32 = vmatpush.msra.mxu0 0.0
    %33 = vmatpush.msra.mxu0 0.0
    %34 = vmatpush.msra.mxu0 0.0
    %35 = vmatpush.msra.mxu0 0.0
    %36 = vmatpush.msra.mxu0 0.0
    %37 = vmatpush.msra.mxu0 0.0
    %38 = vmatpush.msra.mxu0 0.0
    %39 = vmatpush.msra.mxu0 0.0
    %40 = vmatpush.msra.mxu0 %v19
    %41 = vmatpush.msra.mxu0 %v18
    %42 = vmatpush.msra.mxu0 %v17
    %43 = vmatpush.msra.mxu0 %v16
    %44 = vmatmul.f32.gmra.mxu0 %v26
    %v45 = vpop.f32.mrf.mxu0
    %v46 = vadd.f32 %v22, %v45
    %47 = vdwg.mxu0
    %vm48 = vcmask 130048
    %49 = vst.msk [vmem:[#allocation2] sm:$0xff] %vm48, %v46
    // Predicated region
    $region14: #{tpu_custom_call.1} parent=1 // pred_check
      _
    $region15: #{tpu_custom_call.1} parent=1 // pred_check_branch
      %51 = sbr.rel (0) target = $region17
    $region16: #{tpu_custom_call.1} parent=1 // pred_region
      %53 = vsyncadd [#allocation3], 0
      %s55 = sshll.u32 [#allocation2], 4
      %s56 = int_to_ptr.vmem [resolvable:$true] %s55
      %s57 = sshll.u32 %s3, 4
      %s58 = int_to_ptr.hbm [resolvable:$true] %s57
      %60 = dma.vmem_to_hbm [thread:$0]  %s56, 128, %s58, [#allocation3]
    $region17: #{tpu_custom_call.1} parent=1 // pred_fallthru
      _
    // Predicated region
    $region18: #{tpu_custom_call.1} parent=1 // pred_check
      _
    $region19: #{tpu_custom_call.1} parent=1 // pred_check_branch
      %62 = sbr.rel (0) target = $region21
    $region20: #{tpu_custom_call.1} parent=1 // pred_region
      %64 = dma.done [#allocation3], 128
    $region21: #{tpu_custom_call.1} parent=1 // pred_fallthru
      _
    %65 = vsyncpa [#allocation3], 1

</llo_original>
